<compile_context>
chip_gen: v5e
topology: v5e:2x2
jax: 0.10.0
libtpu: 0.0.40
codegen_flags: <defaults>
</compile_context>

<pallas_src>
import jax
import jax.numpy as jnp
from jax import lax
from jax.experimental import pallas as pl
from jax.experimental.pallas import tpu as pltpu


# ---------------------------------------------------------------------------
# helpers
# ---------------------------------------------------------------------------
def _round_up(x, m):
    return ((x + m - 1) // m) * m


def _pad_to(x, shape):
    pads = [(0, t - s) for s, t in zip(x.shape, shape)]
    if all(p == (0, 0) for p in pads):
        return x
    return jnp.pad(x, pads)


# ---------------------------------------------------------------------------
# kernels
# ---------------------------------------------------------------------------
def _question_path_kernel(q_ref, wt1_ref, bt1_ref, wt2_ref, bt2_ref, qfa_ref):
    # q: (B_p, D_txt_p) bf16; wt*: bf16; bt*: (1, H_p) f32; qfa: (B_p, H_p) f32
    h1 = jnp.maximum(
        jnp.dot(q_ref[...], wt1_ref[...], preferred_element_type=jnp.float32)
        + bt1_ref[...],
        0.0,
    ).astype(jnp.bfloat16)  # fused ReLU + bf16 cast (single live copy of h1)
    qfa_ref[...] = jnp.maximum(
        jnp.dot(h1, wt2_ref[...], preferred_element_type=jnp.float32)
        + bt2_ref[...],
        0.0,
    )


def _make_image_joint_kernel(tile_m, b_p, l_per_batch):
    def kernel(img_ref, qfa_ref, wi1_ref, bi1_ref, wi2_ref, bi2_ref,
               out_ref, h1_ref):
        # img:  (TILE_M, D_img_p) bf16   flattened (batch*location) rows
        # qfa:  (B_p, TILE_N)     f32    question_fa columns of this N-tile
        # wi1:  (D_img_p, H_p)    bf16   resident
        # wi2:  (H_p, TILE_N)     bf16   resident / N-tiled
        # bi1:  (1, H_p) f32, bi2: (1, TILE_N) f32
        # out:  (TILE_M, TILE_N); h1 scratch: (TILE_M, H_p) bf16
        n = pl.program_id(1)

        # First layer once per row tile (N is the inner, "arbitrary" grid axis).
        @pl.when(n == 0)
        def _():
            acc1 = jnp.dot(img_ref[...], wi1_ref[...],
                           preferred_element_type=jnp.float32)
            # fuse ReLU + bf16 cast so only one copy of h1 lives (bounds VMEM/vst)
            h1_ref[...] = jnp.maximum(acc1 + bi1_ref[...], 0.0).astype(h1_ref.dtype)

        h2 = jnp.maximum(
            jnp.dot(h1_ref[...], wi2_ref[...], preferred_element_type=jnp.float32)
            + bi2_ref[...],
            0.0,
        )

        # Per-row question_fa selection: row r belongs to batch b iff
        # b*L <= r < (b+1)*L.  One-hot (TILE_M, B_p) @ (B_p, TILE_N) on the MXU
        # implements unsqueeze(1)+expand without any HBM expand or gather.
        row0 = pl.program_id(0) * tile_m
        rows = row0 + lax.broadcasted_iota(jnp.int32, (tile_m, b_p), 0)
        bcol = lax.broadcasted_iota(jnp.int32, (tile_m, b_p), 1)
        lo = bcol * l_per_batch
        onehot = jnp.where((rows >= lo) & (rows < lo + l_per_batch), 1.0, 0.0)
        qfa_rows = jnp.dot(onehot, qfa_ref[...],
                           preferred_element_type=jnp.float32)

        # dropout is identity in eval mode
        out_ref[...] = (h2 * qfa_rows).astype(out_ref.dtype)

    return kernel


# ---------------------------------------------------------------------------
# wrapper
# ---------------------------------------------------------------------------
def two_layer_element_multiply(image_feat, question_embedding,
                               w_i1, b_i1, w_i2, b_i2,
                               w_t1, b_t1, w_t2, b_t2,
                               *, tile_m=512, out_dtype=jnp.bfloat16):
    """image_feat: (B, L, D_img) or (B, D_img); question_embedding: (B, D_txt).

    out_dtype defaults to bf16 (halves the dominant HBM write); pass
    image_feat.dtype to exactly match the torch module's output dtype.
    """
    squeeze_l = image_feat.ndim == 2
    if squeeze_l:
        image_feat = image_feat[:, None, :]

    B, L, D_img = image_feat.shape
    _, D_txt = question_embedding.shape
    H = w_i1.shape[1]

    # lane (128) / sublane friendly padding
    D_img_p = _round_up(D_img, 128)
    D_txt_p = _round_up(D_txt, 128)
    H_p = _round_up(H, 128)
    B_p = _round_up(B, 8)

    # Fold (B, L) into one M axis; balanced row tiles (multiple of 16 for bf16 packing).
    M = B * L
    n_m = pl.cdiv(M, tile_m)
    TILE_M = _round_up(pl.cdiv(M, n_m), 16)
    M_p = n_m * TILE_M

    # bf16 MXU operands; biases stay f32 (accumulation is f32 via preferred_element_type)
    img = _pad_to(image_feat.reshape(M, D_img), (M_p, D_img_p)).astype(jnp.bfloat16)
    q = _pad_to(question_embedding, (B_p, D_txt_p)).astype(jnp.bfloat16)
    wi1 = _pad_to(w_i1, (D_img_p, H_p)).astype(jnp.bfloat16)
    wi2 = _pad_to(w_i2, (H_p, H_p)).astype(jnp.bfloat16)
    wt1 = _pad_to(w_t1, (D_txt_p, H_p)).astype(jnp.bfloat16)
    wt2 = _pad_to(w_t2, (H_p, H_p)).astype(jnp.bfloat16)
    bi1 = _pad_to(b_i1.reshape(1, -1), (1, H_p)).astype(jnp.float32)
    bi2 = _pad_to(b_i2.reshape(1, -1), (1, H_p)).astype(jnp.float32)
    bt1 = _pad_to(b_t1.reshape(1, -1), (1, H_p)).astype(jnp.float32)
    bt2 = _pad_to(b_t2.reshape(1, -1), (1, H_p)).astype(jnp.float32)

    # ---- VMEM budget: query capacity, leave ~25% headroom (v7x: 64 MiB/TC) ----
    try:
        cap_total = int(pltpu.get_tpu_info().vmem_capacity_bytes)
    except Exception:
        cap_total = 64 << 20          # conservative fallback = v7x per-TC VMEM
    budget = (cap_total * 3) // 4

    out_bytes = jnp.dtype(out_dtype).itemsize

    def image_vmem_est(tile_n):
        # conservative: 2 pipeline buffers per input/output (+ scratch + temporaries)
        return int(
            2 * TILE_M * D_img_p * 2                     # image tile (bf16)
            + 2 * (D_img_p * H_p * 2 + H_p * 4)          # W_i1 + b_i1
            + 2 * (H_p * tile_n * 2 + tile_n * 4)        # W_i2 + b_i2
            + 2 * B_p * tile_n * 4                       # question_fa block
            + 2 * TILE_M * tile_n * out_bytes            # output tile
            + TILE_M * H_p * 2                           # h1 scratch (bf16)
            + TILE_M * H_p * 4                           # acc1 temp (f32)
            + 3 * TILE_M * tile_n * 4)                   # acc2 / h2 / qfa_rows temps

    # N-tile the 2nd layer (W_i2 / b_i2 / output columns) only when full residency
    # does not fit the budget (e.g. H~5000 on v7x); else keep one full-width tile.
    TILE_N = 128
    c = H_p
    while c >= 128:
        if H_p % c == 0 and image_vmem_est(c) <= budget:
            TILE_N = c
            break
        c -= 128
    n_n = H_p // TILE_N
    # TODO(synk): if even TILE_N=128 overflows (huge D_img*H), W_i1 would also need
    # K-streaming; not needed for mmf-scale shapes.

    image_vmem_limit = int(min(budget,
                               max(image_vmem_est(TILE_N) * 5 // 4 + (2 << 20),
                                   16 << 20)))

    # ---- question path: one small batched MXU pass (hoisted out of the grid) ----
    q_vmem_est = int(2 * (B_p * D_txt_p * 2 + D_txt_p * H_p * 2 + H_p * H_p * 2
                          + 2 * H_p * 4 + B_p * H_p * 4) + 4 * B_p * H_p * 4)
    q_cost = pl.CostEstimate(
        flops=int(2 * B_p * H_p * (D_txt_p + H_p)),
        transcendentals=0,
        bytes_accessed=int(q.size * 2 + (wt1.size + wt2.size) * 2
                           + (bt1.size + bt2.size) * 4 + B_p * H_p * 4),
    )
    question_fa = pl.pallas_call(
        _question_path_kernel,
        out_shape=jax.ShapeDtypeStruct((B_p, H_p), jnp.float32),
        grid=(1,),
        in_specs=[
            pl.BlockSpec((B_p, D_txt_p), lambda i: (0, 0)),
            pl.BlockSpec((D_txt_p, H_p), lambda i: (0, 0)),
            pl.BlockSpec((1, H_p), lambda i: (0, 0)),
            pl.BlockSpec((H_p, H_p), lambda i: (0, 0)),
            pl.BlockSpec((1, H_p), lambda i: (0, 0)),
        ],
        out_specs=pl.BlockSpec((B_p, H_p), lambda i: (0, 0)),
        compiler_params=pltpu.CompilerParams(
            dimension_semantics=("arbitrary",),
            vmem_limit_bytes=int(min(budget, max(q_vmem_est * 2, 16 << 20)))),
        cost_estimate=q_cost,
    )(q, wt1, bt1, wt2, bt2)

    # ---- image path + fused broadcast multiply, grid = (row tiles, column tiles) ----
    img_cost = pl.CostEstimate(
        flops=int(2 * M_p * H_p * (D_img_p + H_p + B_p)),
        transcendentals=0,
        bytes_accessed=int(img.size * 2 + (wi1.size + wi2.size) * 2
                           + (bi1.size + bi2.size) * 4 + B_p * H_p * 4
                           + M_p * H_p * out_bytes),
    )
    kernel = _make_image_joint_kernel(TILE_M, B_p, L)

    def _run_image(single_buffer_resident):
        def spec(shape, index_map, constant):
            if constant and single_buffer_resident:
                # constant-index (resident) block: one pipeline buffer is enough
                return pl.BlockSpec(shape, index_map, pipeline_mode=pl.Buffered(1))
            return pl.BlockSpec(shape, index_map)

        n_const = (n_n == 1)
        return pl.pallas_call(
            kernel,
            out_shape=jax.ShapeDtypeStruct((M_p, H_p), out_dtype),
            grid=(n_m, n_n),
            in_specs=[
                pl.BlockSpec((TILE_M, D_img_p), lambda m, n: (m, 0)),  # image rows
                spec((B_p, TILE_N), lambda m, n: (0, n), n_const),     # question_fa
                spec((D_img_p, H_p), lambda m, n: (0, 0), True),       # W_i1 (resident)
                spec((1, H_p), lambda m, n: (0, 0), True),             # b_i1
                spec((H_p, TILE_N), lambda m, n: (0, n), n_const),     # W_i2
                spec((1, TILE_N), lambda m, n: (0, n), n_const),       # b_i2
            ],
            out_specs=pl.BlockSpec((TILE_M, TILE_N), lambda m, n: (m, n)),
            scratch_shapes=[pltpu.VMEM((TILE_M, H_p), jnp.bfloat16)],  # h1
            compiler_params=pltpu.CompilerParams(
                dimension_semantics=("parallel", "arbitrary"),
                vmem_limit_bytes=image_vmem_limit),
            cost_estimate=img_cost,
        )(img, question_fa, wi1, bi1, wi2, bi2)

    try:
        joint_p = jax.block_until_ready(_run_image(True))
    except Exception:
        # pl.Buffered(1) rejected by this JAX/Mosaic version -> default pipelining
        # (VMEM limit above was already sized for 2 buffers per input).
        joint_p = _run_image(False)

    joint = joint_p[:M, :H].reshape(B, L, H)
    if squeeze_l:
        joint = joint[:, 0, :]
    return joint


# ---------------------------------------------------------------------------
# parameter glue + pure-JAX reference
# ---------------------------------------------------------------------------
def make_weight_norm_linear_params(key, in_dim, out_dim):
    """Synthetic params for weight_norm(nn.Linear(in, out), dim=None).

    Returns the effective weight in (in_dim, out_dim) layout (for x @ W) and a
    (1, out_dim) bias.  weight_norm with dim=None: W_eff = g * V / ||V||_F, scalar g.
    """
    kv, kg, kb = jax.random.split(key, 3)
    v = jax.random.normal(kv, (out_dim, in_dim), dtype=jnp.float32) * 0.05
    g = jax.random.uniform(kg, (), dtype=jnp.float32, minval=0.5, maxval=1.5)
    b = jax.random.normal(kb, (out_dim,), dtype=jnp.float32) * 0.01
    w_eff = g * v / jnp.sqrt(jnp.sum(v * v))
    return w_eff.T, b.reshape(1, out_dim)


def reference_forward(image_feat, question_embedding,
                      w_i1, b_i1, w_i2, b_i2, w_t1, b_t1, w_t2, b_t2):
    """Pure-JAX f32 reference of TwoLayerElementMultiply.forward (eval mode)."""
    hp = jax.lax.Precision.HIGHEST

    def rwn(x, w, b):
        return jnp.maximum(jnp.dot(x, w, precision=hp) + b, 0.0)

    image_fa = rwn(rwn(image_feat, w_i1, b_i1), w_i2, b_i2)
    question_fa = rwn(rwn(question_embedding, w_t1, b_t1), w_t2, b_t2)
    if image_feat.ndim == 3:
        question_fa = question_fa[:, None, :]          # unsqueeze(1) + broadcast
    return image_fa * question_fa                      # dropout = identity in eval


# TODO(synk): nn.Dropout is identity in eval mode and is not implemented as a kernel
# (training-mode dropout would need pltpu.prng_* inside the image kernel).

if __name__ == "__main__":
    B, L = 2, 16               # batch, num image locations
    D_IMG, D_TXT, H = 64, 32, 128

    key = jax.random.PRNGKey(0)
    k_img, k_q, k_i1, k_i2, k_t1, k_t2 = jax.random.split(key, 6)

    image_feat = jax.random.normal(k_img, (B, L, D_IMG), dtype=jnp.float32)
    question_embedding = jax.random.normal(k_q, (B, D_TXT), dtype=jnp.float32)

    w_i1, b_i1 = make_weight_norm_linear_params(k_i1, D_IMG, H)
    w_i2, b_i2 = make_weight_norm_linear_params(k_i2, H, H)
    w_t1, b_t1 = make_weight_norm_linear_params(k_t1, D_TXT, H)
    w_t2, b_t2 = make_weight_norm_linear_params(k_t2, D_TXT if False else H, H)

    out = two_layer_element_multiply(
        image_feat, question_embedding,
        w_i1, b_i1, w_i2, b_i2, w_t1, b_t1, w_t2, b_t2,
    )
    out = jax.block_until_ready(out)

    ref = reference_forward(
        image_feat, question_embedding,
        w_i1, b_i1, w_i2, b_i2, w_t1, b_t1, w_t2, b_t2,
    )
    assert out.shape == (B, L, H), out.shape
    # kernel uses bf16 MXU operands / bf16 output with f32 accumulation; values are
    # O(1e-3), so bf16 rounding error is far below this tolerance.
    out_f32 = out.astype(jnp.float32)
    assert jnp.allclose(out_f32, ref, atol=1e-2, rtol=1e-2), \
        float(jnp.max(jnp.abs(out_f32 - ref)))

    print("KERNEL_OK")
</pallas_src>

<mosaic_0001>
module attributes {stable_mosaic.version = 11 : i64} {
  func.func @_question_path_kernel(%arg0: i32, %arg1: memref<8x128xbf16, #tpu.memory_space<vmem>>, %arg2: memref<128x128xbf16, #tpu.memory_space<vmem>>, %arg3: memref<1x128xf32, #tpu.memory_space<vmem>>, %arg4: memref<128x128xbf16, #tpu.memory_space<vmem>>, %arg5: memref<1x128xf32, #tpu.memory_space<vmem>>, %arg6: memref<8x128xf32, #tpu.memory_space<vmem>>) attributes {dimension_semantics = [#tpu.dimension_semantics<arbitrary>], iteration_bounds = array<i64: 1>, scalar_prefetch = 0 : i64, scratch_operands = 0 : i64, tpu.core_type = #tpu.core_type<tc>, window_params = [{pipeline_mode = #tpu.pipeline_mode<synchronous>, transform_indices = @transform_0, window_bounds = array<i64: 8, 128>}, {pipeline_mode = #tpu.pipeline_mode<synchronous>, transform_indices = @transform_1, window_bounds = array<i64: 128, 128>}, {pipeline_mode = #tpu.pipeline_mode<synchronous>, transform_indices = @transform_2, window_bounds = array<i64: 1, 128>}, {pipeline_mode = #tpu.pipeline_mode<synchronous>, transform_indices = @transform_3, window_bounds = array<i64: 128, 128>}, {pipeline_mode = #tpu.pipeline_mode<synchronous>, transform_indices = @transform_4, window_bounds = array<i64: 1, 128>}, {pipeline_mode = #tpu.pipeline_mode<synchronous>, transform_indices = @transform_5, window_bounds = array<i64: 8, 128>}]} {
    %c0 = arith.constant 0 : index
    %c0_0 = arith.constant 0 : index
    %0 = vector.load %arg1[%c0, %c0_0] : memref<8x128xbf16, #tpu.memory_space<vmem>>, vector<8x128xbf16>
    %c0_1 = arith.constant 0 : index
    %c0_2 = arith.constant 0 : index
    %1 = vector.load %arg2[%c0_1, %c0_2] : memref<128x128xbf16, #tpu.memory_space<vmem>>, vector<128x128xbf16>
    %cst = arith.constant dense<0.000000e+00> : vector<8x128xf32>
    %2 = tpu.matmul %0, %1, %cst {dimension_numbers = #tpu.dot_dimension_numbers<[1], [0], [0], [1], [0, 0, 1, 1], [], []>} : vector<8x128xbf16>, vector<128x128xbf16>, vector<8x128xf32> -> vector<8x128xf32>
    %c0_3 = arith.constant 0 : index
    %c0_4 = arith.constant 0 : index
    %3 = vector.load %arg3[%c0_3, %c0_4] : memref<1x128xf32, #tpu.memory_space<vmem>>, vector<1x128xf32>
    %4 = vector.broadcast %3 : vector<1x128xf32> to vector<8x128xf32>
    %5 = arith.addf %2, %4 : vector<8x128xf32>
    %cst_5 = arith.constant 0.000000e+00 : f32
    %6 = vector.broadcast %cst_5 : f32 to vector<8x128xf32>
    %7 = arith.maximumf %5, %6 : vector<8x128xf32>
    %8 = arith.truncf %7 : vector<8x128xf32> to vector<8x128xbf16>
    %c0_6 = arith.constant 0 : index
    %c0_7 = arith.constant 0 : index
    %9 = vector.load %arg4[%c0_6, %c0_7] : memref<128x128xbf16, #tpu.memory_space<vmem>>, vector<128x128xbf16>
    %cst_8 = arith.constant dense<0.000000e+00> : vector<8x128xf32>
    %10 = tpu.matmul %8, %9, %cst_8 {dimension_numbers = #tpu.dot_dimension_numbers<[1], [0], [0], [1], [0, 0, 1, 1], [], []>} : vector<8x128xbf16>, vector<128x128xbf16>, vector<8x128xf32> -> vector<8x128xf32>
    %c0_9 = arith.constant 0 : index
    %c0_10 = arith.constant 0 : index
    %11 = vector.load %arg5[%c0_9, %c0_10] : memref<1x128xf32, #tpu.memory_space<vmem>>, vector<1x128xf32>
    %12 = vector.broadcast %11 : vector<1x128xf32> to vector<8x128xf32>
    %13 = arith.addf %10, %12 : vector<8x128xf32>
    %cst_11 = arith.constant 0.000000e+00 : f32
    %14 = vector.broadcast %cst_11 : f32 to vector<8x128xf32>
    %15 = arith.maximumf %13, %14 : vector<8x128xf32>
    %c0_12 = arith.constant 0 : index
    %c0_13 = arith.constant 0 : index
    %16 = vector.load %arg6[%c0_12, %c0_13] : memref<8x128xf32, #tpu.memory_space<vmem>>, vector<8x128xf32>
    tpu.vector_store %arg6[%c0_12, %c0_13], %15 {strides = array<i32>} : memref<8x128xf32, #tpu.memory_space<vmem>>, vector<8x128xf32>,
    return
  }
  func.func @transform_0(%arg0: i32) -> (i32, i32) {
    %c0_i32 = arith.constant 0 : i32
    %c0_i32_0 = arith.constant 0 : i32
    %c0_i32_1 = arith.constant 0 : i32
    return %c0_i32, %c0_i32_0 : i32, i32
  }
  func.func @transform_1(%arg0: i32) -> (i32, i32) {
    %c0_i32 = arith.constant 0 : i32
    %c0_i32_0 = arith.constant 0 : i32
    %c0_i32_1 = arith.constant 0 : i32
    return %c0_i32, %c0_i32_0 : i32, i32
  }
  func.func @transform_2(%arg0: i32) -> (i32, i32) {
    %c0_i32 = arith.constant 0 : i32
    %c0_i32_0 = arith.constant 0 : i32
    %c0_i32_1 = arith.constant 0 : i32
    return %c0_i32, %c0_i32_0 : i32, i32
  }
  func.func @transform_3(%arg0: i32) -> (i32, i32) {
    %c0_i32 = arith.constant 0 : i32
    %c0_i32_0 = arith.constant 0 : i32
    %c0_i32_1 = arith.constant 0 : i32
    return %c0_i32, %c0_i32_0 : i32, i32
  }
  func.func @transform_4(%arg0: i32) -> (i32, i32) {
    %c0_i32 = arith.constant 0 : i32
    %c0_i32_0 = arith.constant 0 : i32
    %c0_i32_1 = arith.constant 0 : i32
    return %c0_i32, %c0_i32_0 : i32, i32
  }
  func.func @transform_5(%arg0: i32) -> (i32, i32) {
    %c0_i32 = arith.constant 0 : i32
    %c0_i32_0 = arith.constant 0 : i32
    %c0_i32_1 = arith.constant 0 : i32
    return %c0_i32, %c0_i32_0 : i32, i32
  }
}

</mosaic_0001>

<llo_original>
// kernel: tpu_custom_call.1
$region0: #{tpu_custom_call.1}
  #allocation0 [shape = 'u32[]', space=smem, size = 0x4, offset = 0x4, fixed_abs, tag = 'smem constant byte address 0x4 - core index']
  #allocation1 [shape = 'u32[72,128]{1,0:T(1,128)}', space=vmem, size = 0x9000, scoped, tag = 'internal scratch']
  %s0 = inlined_call_operand.hbm [shape: bf16[8,128], index: 0, kind: input, shape index: {}]
  %s1 = inlined_call_operand.hbm [shape: bf16[128,128], index: 1, kind: input, shape index: {}]
  %s2 = inlined_call_operand.vmem [shape: f32[1,128], index: 2, kind: input, shape index: {}]
  %s3 = inlined_call_operand.hbm [shape: bf16[128,128], index: 3, kind: input, shape index: {}]
  %s4 = inlined_call_operand.vmem [shape: f32[1,128], index: 4, kind: input, shape index: {}]
  %s5 = inlined_call_operand.hbm [shape: f32[8,128], index: 5, kind: output, shape index: {}]
  %s6 = sld [smem:[#allocation0]]
  $region42: #{tpu_custom_call.1} parent=0
    _
  %s8 = ssub.s32 1, %s6
  %s9 = scalar_select 0, %s8, %s6
  $region1: #{tpu_custom_call.1} parent=0
    #allocation2 [shape = 'u8[2048]{0}', space=vmem, size = 0x800, scoped, tag = 'input window, operand 0, single buffered']
    #allocation3 [shape = 's32[1]{0}', space=sflag, size = 0x4, scoped, tag = 'scoped memory for tpu_custom_call.1']
    #allocation4 [shape = 's32[1]{0}', space=sflag, size = 0x4, scoped, tag = 'scoped memory for tpu_custom_call.1']
    #allocation5 [shape = 'u8[32768]{0}', space=vmem, size = 0x8000, scoped, tag = 'input window, operand 1, single buffered']
    #allocation6 [shape = 's32[1]{0}', space=sflag, size = 0x4, scoped, tag = 'scoped memory for tpu_custom_call.1']
    #allocation7 [shape = 'u8[32768]{0}', space=vmem, size = 0x8000, scoped, tag = 'input window, operand 3, single buffered']
    #allocation8 [shape = 'u8[4096]{0}', space=vmem, size = 0x1000, scoped, tag = 'output window, operand 0, single buffered']
    %10 = vsyncpa [#allocation3], 0
    %11 = vsyncpa [#allocation6], 0
    %12 = vsyncpa [#allocation4], 0
    // Predicated region
    $region2: #{tpu_custom_call.1} parent=1 // pred_check
      _
    $region3: #{tpu_custom_call.1} parent=1 // pred_check_branch
      %14 = sbr.rel (0) target = $region5
    $region4: #{tpu_custom_call.1} parent=1 // pred_region
      %16 = vsyncadd [#allocation3], 0
      %s18 = sshll.u32 %s0, 4
      %s19 = int_to_ptr.hbm [resolvable:$true] %s18
      %s20 = sshll.u32 [#allocation2], 4
      %s21 = int_to_ptr.vmem [resolvable:$true] %s20
      %23 = dma.hbm_to_vmem [thread:$0]  %s19, 64, %s21, [#allocation3]
    $region5: #{tpu_custom_call.1} parent=1 // pred_fallthru
      _
    // Predicated region
    $region6: #{tpu_custom_call.1} parent=1 // pred_check
      _
    $region7: #{tpu_custom_call.1} parent=1 // pred_check_branch
      %25 = sbr.rel (0) target = $region9
    $region8: #{tpu_custom_call.1} parent=1 // pred_region
      %27 = vsyncadd [#allocation6], 0
      %s28 = sshll.u32 %s1, 4
      %s29 = int_to_ptr.hbm [resolvable:$true] %s28
      %s30 = sshll.u32 [#allocation5], 4
      %s31 = int_to_ptr.vmem [resolvable:$true] %s30
      %36 = dma.hbm_to_vmem [thread:$0]  %s29, 1024, %s31, [#allocation6], 64, 64, 4
    $region9: #{tpu_custom_call.1} parent=1 // pred_fallthru
      _
    // Predicated region
    $region10: #{tpu_custom_call.1} parent=1 // pred_check
      _
    $region11: #{tpu_custom_call.1} parent=1 // pred_check_branch
      %38 = sbr.rel (0) target = $region13
    $region12: #{tpu_custom_call.1} parent=1 // pred_region
      _
    $region13: #{tpu_custom_call.1} parent=1 // pred_fallthru
      _
    // Predicated region
    $region14: #{tpu_custom_call.1} parent=1 // pred_check
      _
    $region15: #{tpu_custom_call.1} parent=1 // pred_check_branch
      %40 = sbr.rel (0) target = $region17
    $region16: #{tpu_custom_call.1} parent=1 // pred_region
      %42 = vsyncadd [#allocation6], 0
      %s43 = sshll.u32 %s3, 4
      %s44 = int_to_ptr.hbm [resolvable:$true] %s43
      %s45 = sshll.u32 [#allocation7], 4
      %s46 = int_to_ptr.vmem [resolvable:$true] %s45
      %51 = dma.hbm_to_vmem [thread:$0]  %s44, 1024, %s46, [#allocation6], 64, 64, 4
    $region17: #{tpu_custom_call.1} parent=1 // pred_fallthru
      _
    // Predicated region
    $region18: #{tpu_custom_call.1} parent=1 // pred_check
      _
    $region19: #{tpu_custom_call.1} parent=1 // pred_check_branch
      %53 = sbr.rel (0) target = $region21
    $region20: #{tpu_custom_call.1} parent=1 // pred_region
      _
    $region21: #{tpu_custom_call.1} parent=1 // pred_fallthru
      _
    // Predicated region
    $region22: #{tpu_custom_call.1} parent=1 // pred_check
      _
    $region23: #{tpu_custom_call.1} parent=1 // pred_check_branch
      %55 = sbr.rel (0) target = $region25
    $region24: #{tpu_custom_call.1} parent=1 // pred_region
      %57 = dma.done [#allocation3], 64
    $region25: #{tpu_custom_call.1} parent=1 // pred_fallthru
      _
    // Predicated region
    $region26: #{tpu_custom_call.1} parent=1 // pred_check
      _
    $region27: #{tpu_custom_call.1} parent=1 // pred_check_branch
      %59 = sbr.rel (0) target = $region29
    $region28: #{tpu_custom_call.1} parent=1 // pred_region
      %61 = dma.done [#allocation6], 1024
    $region29: #{tpu_custom_call.1} parent=1 // pred_fallthru
      _
    // Predicated region
    $region30: #{tpu_custom_call.1} parent=1 // pred_check
      _
    $region31: #{tpu_custom_call.1} parent=1 // pred_check_branch
      %63 = sbr.rel (0) target = $region33
    $region32: #{tpu_custom_call.1} parent=1 // pred_region
      %65 = dma.done [#allocation6], 1024
    $region33: #{tpu_custom_call.1} parent=1 // pred_fallthru
      _
    %v66 = vld [vmem:[#allocation2] sm:$0xf]
    %v67 = vld [vmem:[#allocation5] sm:$0xf]
    %v68 = vld [vmem:[#allocation5 + $0x4] sm:$0xf]
    %v69 = vld [vmem:[#allocation5 + $0x8] sm:$0xf]
    %v70 = vld [vmem:[#allocation5 + $0xc] sm:$0xf]
    %v71 = vld [vmem:[#allocation5 + $0x10] sm:$0xf]
    %v72 = vld [vmem:[#allocation5 + $0x14] sm:$0xf]
    %v73 = vld [vmem:[#allocation5 + $0x18] sm:$0xf]
    %v74 = vld [vmem:[#allocation5 + $0x1c] sm:$0xf]
    %v75 = vld [vmem:[#allocation5 + $0x20] sm:$0xf]
    %v76 = vld [vmem:[#allocation5 + $0x24] sm:$0xf]
    %v77 = vld [vmem:[#allocation5 + $0x28] sm:$0xf]
    %v78 = vld [vmem:[#allocation5 + $0x2c] sm:$0xf]
    %v79 = vld [vmem:[#allocation5 + $0x30] sm:$0xf]
    %v80 = vld [vmem:[#allocation5 + $0x34] sm:$0xf]
    %v81 = vld [vmem:[#allocation5 + $0x38] sm:$0xf]
    %v82 = vld [vmem:[#allocation5 + $0x3c] sm:$0xf]
    %v83 = vld [vmem:[%s2] sm:$0x1]
    %v85 = vperm.slane %v83, 0
    %v103 = vunpack.c.l.b16 %v67
    %v104 = vunpack.c.l.b16 %v68
    %v105 = vunpack.c.l.b16 %v69
    %v106 = vunpack.c.l.b16 %v70
    %v107 = vunpack.c.l.b16 %v71
    %v108 = vunpack.c.l.b16 %v72
    %v109 = vunpack.c.l.b16 %v73
    %v110 = vunpack.c.l.b16 %v74
    %v111 = vunpack.c.l.b16 %v75
    %v112 = vunpack.c.l.b16 %v76
    %v113 = vunpack.c.l.b16 %v77
    %v114 = vunpack.c.l.b16 %v78
    %v115 = vunpack.c.l.b16 %v79
    %v116 = vunpack.c.l.b16 %v80
    %v117 = vunpack.c.l.b16 %v81
    %v118 = vunpack.c.l.b16 %v82
    %v119 = vpack.c.b16 %v104, %v103
    %v120 = vpack.c.b16 %v106, %v105
    %v121 = vpack.c.b16 %v108, %v107
    %v122 = vpack.c.b16 %v110, %v109
    %v123 = vpack.c.b16 %v112, %v111
    %v124 = vpack.c.b16 %v114, %v113
    %v125 = vpack.c.b16 %v116, %v115
    %v126 = vpack.c.b16 %v118, %v117
    %135 = vmatpush.bf16.msra.mxu0 %v126
    %136 = vmatpush.bf16.msra.mxu0 %v125
    %137 = vmatpush.bf16.msra.mxu0 %v124
    %138 = vmatpush.bf16.msra.mxu0 %v123
    %139 = vmatpush.bf16.msra.mxu0 %v122
    %140 = vmatpush.bf16.msra.mxu0 %v121
    %141 = vmatpush.bf16.msra.mxu0 %v120
    %142 = vmatpush.bf16.msra.mxu0 %v119
    %143 = vmatmul.bf16.gmra.mxu0 %v66
    %v144 = vpop.f32.mrf.mxu0
    %v145 = vadd.f32 %v85, %v144
    %v146 = vpop.f32.mrf.mxu0
    %147 = vdwg.mxu0
    %v148 = vmax.f32 %v145, 0.0
    %v149 = vpack.c.bf16 %v148, %v148
    %v150 = vld [vmem:[#allocation7] sm:$0xf]
    %v151 = vld [vmem:[#allocation7 + $0x4] sm:$0xf]
    %v152 = vld [vmem:[#allocation7 + $0x8] sm:$0xf]
    %v153 = vld [vmem:[#allocation7 + $0xc] sm:$0xf]
    %v154 = vld [vmem:[#allocation7 + $0x10] sm:$0xf]
    %v155 = vld [vmem:[#allocation7 + $0x14] sm:$0xf]
    %v156 = vld [vmem:[#allocation7 + $0x18] sm:$0xf]
    %v157 = vld [vmem:[#allocation7 + $0x1c] sm:$0xf]
    %v158 = vld [vmem:[#allocation7 + $0x20] sm:$0xf]
    %v159 = vld [vmem:[#allocation7 + $0x24] sm:$0xf]
    %v160 = vld [vmem:[#allocation7 + $0x28] sm:$0xf]
    %v161 = vld [vmem:[#allocation7 + $0x2c] sm:$0xf]
    %v162 = vld [vmem:[#allocation7 + $0x30] sm:$0xf]
    %v163 = vld [vmem:[#allocation7 + $0x34] sm:$0xf]
    %v164 = vld [vmem:[#allocation7 + $0x38] sm:$0xf]
    %v165 = vld [vmem:[#allocation7 + $0x3c] sm:$0xf]
    %v166 = vld [vmem:[%s4] sm:$0x1]
    %v168 = vperm.slane %v166, 0
    %v186 = vunpack.c.l.b16 %v150
    %v187 = vunpack.c.l.b16 %v151
    %v188 = vunpack.c.l.b16 %v152
    %v189 = vunpack.c.l.b16 %v153
    %v190 = vunpack.c.l.b16 %v154
    %v191 = vunpack.c.l.b16 %v155
    %v192 = vunpack.c.l.b16 %v156
    %v193 = vunpack.c.l.b16 %v157
    %v194 = vunpack.c.l.b16 %v158
    %v195 = vunpack.c.l.b16 %v159
    %v196 = vunpack.c.l.b16 %v160
    %v197 = vunpack.c.l.b16 %v161
    %v198 = vunpack.c.l.b16 %v162
    %v199 = vunpack.c.l.b16 %v163
    %v200 = vunpack.c.l.b16 %v164
    %v201 = vunpack.c.l.b16 %v165
    %v202 = vpack.c.b16 %v187, %v186
    %v203 = vpack.c.b16 %v189, %v188
    %v204 = vpack.c.b16 %v191, %v190
    %v205 = vpack.c.b16 %v193, %v192
    %v206 = vpack.c.b16 %v195, %v194
    %v207 = vpack.c.b16 %v197, %v196
    %v208 = vpack.c.b16 %v199, %v198
    %v209 = vpack.c.b16 %v201, %v200
    %218 = vmatpush.bf16.msra.mxu0 %v209
    %219 = vmatpush.bf16.msra.mxu0 %v208
    %220 = vmatpush.bf16.msra.mxu0 %v207
    %221 = vmatpush.bf16.msra.mxu0 %v206
    %222 = vmatpush.bf16.msra.mxu0 %v205
    %223 = vmatpush.bf16.msra.mxu0 %v204
    %224 = vmatpush.bf16.msra.mxu0 %v203
    %225 = vmatpush.bf16.msra.mxu0 %v202
    %226 = vmatmul.bf16.gmra.mxu0 %v149
    %v227 = vpop.f32.mrf.mxu0
    %v228 = vadd.f32 %v168, %v227
    %v229 = vpop.f32.mrf.mxu0
    %230 = vdwg.mxu0
    %v231 = vmax.f32 %v228, 0.0
    %232 = vst [vmem:[#allocation8] sm:$0xff] %v231
    // Predicated region
    $region34: #{tpu_custom_call.1} parent=1 // pred_check
      _
    $region35: #{tpu_custom_call.1} parent=1 // pred_check_branch
      %234 = sbr.rel (0) target = $region37
    $region36: #{tpu_custom_call.1} parent=1 // pred_region
      %236 = vsyncadd [#allocation4], 0
      %s238 = sshll.u32 [#allocation8], 4
      %s239 = int_to_ptr.vmem [resolvable:$true] %s238
      %s240 = sshll.u32 %s5, 4
      %s241 = int_to_ptr.hbm [resolvable:$true] %s240
      %243 = dma.vmem_to_hbm [thread:$0]  %s239, 128, %s241, [#allocation4]
    $region37: #{tpu_custom_call.1} parent=1 // pred_fallthru
      _
    // Predicated region
    $region38: #{tpu_custom_call.1} parent=1 // pred_check
      _
    $region39: #{tpu_custom_call.1} parent=1 // pred_check_branch
      %245 = sbr.rel (0) target = $region41
    $region40: #{tpu_custom_call.1} parent=1 // pred_region
      %247 = dma.done [#allocation4], 128
    $region41: #{tpu_custom_call.1} parent=1 // pred_fallthru
      _
    %248 = vsyncpa [#allocation3], 1
    %249 = vsyncpa [#allocation6], 1
    %250 = vsyncpa [#allocation4], 1

</llo_original>
